<compile_context>
chip_gen: v5e
topology: v5e:2x2
jax: 0.10.0
libtpu: 0.0.40
codegen_flags: <defaults>
</compile_context>

<pallas_src>
import jax
import jax.numpy as jnp
import numpy as np
from jax import lax
from jax.experimental import pallas as pl
from jax.experimental.pallas import tpu as pltpu


def _cdiv(a, b):
    return -(-a // b)


def _round_up(n, m):
    return ((n + m - 1) // m) * m


# ---------------------------------------------------------------------------
# Kernel
# ---------------------------------------------------------------------------
def _model_kernel(x_ref,        # [3, TB]  f32   input tile (feature-major)
                  w_hid_ref,    # [32,128] bf16  packed hidden 32x32 weights
                  p_aux_ref,    # [32, 8]  f32   cols 0-2: W0, col 3: b0, cols 4-7: hidden biases
                  w_out_ref,    # [1, 32]  bf16  Linear(32,1) weight
                  b_out_ref,    # [1, 1]   f32   Linear(32,1) bias
                  o_ref):       # [1, TB]  f32   output tile
    p = p_aux_ref[...]                               # [32, 8]
    x = x_ref[...]                                   # [3, TB]

    # Layer 0: Linear(3, 32).  K=3 would waste an MXU pass -> three VPU FMAs
    # in f32 (the [1,TB]->[32,TB] sublane broadcasts ride the XLU slot, which
    # is otherwise idle here).
    h = (p[:, 0:1] * x[0:1, :]
         + p[:, 1:2] * x[1:2, :]
         + p[:, 2:3] * x[2:3, :]
         + p[:, 3:4])
    h = jnp.maximum(h, 0.0)                          # [32, TB] f32

    def dense_relu(h, j):
        # Hidden layer j (Linear(32,32) or a folded Conv1d(16,32,k=2)):
        # bf16 operands -> single MXU pass, f32 accumulation; bias/ReLU in f32.
        w = w_hid_ref[:, 32 * j:32 * (j + 1)]        # [32, 32] bf16, static slice
        y = jnp.dot(w, h.astype(jnp.bfloat16),
                    preferred_element_type=jnp.float32)
        return jnp.maximum(y + p[:, 4 + j:5 + j], 0.0)

    h = dense_relu(h, 0)   # Linear(32,32)             + ReLU (+ Dropout p=0)
    h = dense_relu(h, 1)   # Conv1d #1 folded to 32x32 + ReLU (+ Dropout p=0)
    h = dense_relu(h, 2)   # Conv1d #2 folded to 32x32 + ReLU (+ Dropout p=0)
    h = dense_relu(h, 3)   # Conv1d #3 folded to 32x32 + ReLU (+ Dropout p=0)

    z = jnp.dot(w_out_ref[...], h.astype(jnp.bfloat16),
                preferred_element_type=jnp.float32) + b_out_ref[...]
    # NOTE: padded batch columns produce a constant here; the wrapper slices
    # them off -- never reduce over the raw padded output.
    o_ref[...] = jax.nn.sigmoid(z)                   # [1, TB] lane-dense store


# ---------------------------------------------------------------------------
# Wrapper
# ---------------------------------------------------------------------------
def actual_custom_model_forward(x, kernel_params, *, block_b=16384, min_steps=4):
    """x: [B, 3] float32 -> [B, 1] float32.

    kernel_params = (w_hid [32,128] bf16, p_aux [32,8] f32,
                     w_out [1,32] bf16, b_out [1,1] f32) from to_kernel_params().
    """
    w_hid, p_aux, w_out, b_out = kernel_params
    B = x.shape[0]

    # Feature-major so every kernel DMA / matmul / store is lane-dense.
    # (The wrapper-side transpose is one small XLA op; feed feature-major data
    # directly to skip it entirely.)
    xt = x.astype(jnp.float32).T                     # [3, B]

    # Batch tile: multiple of 128 lanes, up to block_b (amortizes the
    # ~0.35us/step grid overhead), but capped so the grid always has
    # >= min_steps steps -- v7x has 2 TensorCores and "parallel" sharding
    # needs >= 2 steps; extra steps also hide the pipeline ramp.
    block_b = max(128, (block_b // 128) * 128)
    cap = _round_up(max(_cdiv(B, min_steps), 128), 128)
    TB = min(block_b, cap)
    Bp = _round_up(B, TB)
    if Bp != B:
        xt = jnp.pad(xt, ((0, 0), (0, Bp - B)))
    grid = (Bp // TB,)

    in_specs = [
        pl.BlockSpec((3, TB), lambda i: (0, i)),     # input tile
        pl.BlockSpec(w_hid.shape, lambda i: (0, 0)),  # constant index_map ->
        pl.BlockSpec(p_aux.shape, lambda i: (0, 0)),  #   VMEM-resident params
        pl.BlockSpec(w_out.shape, lambda i: (0, 0)),
        pl.BlockSpec(b_out.shape, lambda i: (0, 0)),
    ]
    out_spec = pl.BlockSpec((1, TB), lambda i: (0, i))

    param_bytes = sum(int(np.prod(p.shape)) * p.dtype.itemsize
                      for p in kernel_params)
    cost = pl.CostEstimate(
        flops=2 * B * (3 * 32 + 4 * 32 * 32 + 32),
        transcendentals=B,                           # final sigmoid
        bytes_accessed=4 * B * (3 + 1) + param_bytes,
    )

    # Scoped-VMEM budget: a handful of live [32,TB] f32 temporaries plus the
    # double-buffered I/O tiles.  32 MiB covers TB<=16K on every chip (v5e's
    # default scoped limit is only 16 MiB); larger tiles scale the limit up
    # while staying under v7x's 64 MiB physical VMEM.
    vmem_limit = int(min(56 << 20, max(32 << 20, 1536 * TB)))

    out = pl.pallas_call(
        _model_kernel,
        out_shape=jax.ShapeDtypeStruct((1, Bp), jnp.float32),
        grid=grid,
        in_specs=in_specs,
        out_specs=out_spec,
        compiler_params=pltpu.CompilerParams(
            dimension_semantics=("parallel",),       # megacore sharding on v7x
            vmem_limit_bytes=vmem_limit),
        cost_estimate=cost,
    )(xt, w_hid, p_aux, w_out, b_out)

    return out[:, :B].T                              # [B, 1]


# ---------------------------------------------------------------------------
# Parameters (native PyTorch layouts) and packing into kernel layout
# ---------------------------------------------------------------------------
def init_raw_params(key):
    """Deterministic params in native PyTorch layouts."""
    ks = jax.random.split(key, 12)

    def lin(kw, kb, fin, fout):
        w = jax.random.normal(kw, (fout, fin), jnp.float32) * 0.1   # torch [out, in]
        b = jax.random.normal(kb, (fout,), jnp.float32) * 0.1
        return w, b

    def conv(kw, kb):
        w = jax.random.normal(kw, (32, 16, 2), jnp.float32) * 0.1   # torch [out, in_c, k]
        b = jax.random.normal(kb, (32,), jnp.float32) * 0.1
        return w, b

    w0, b0 = lin(ks[0], ks[1], 3, 32)
    w2, b2 = lin(ks[2], ks[3], 32, 32)
    w5, b5 = conv(ks[4], ks[5])
    w8, b8 = conv(ks[6], ks[7])
    w11, b11 = conv(ks[8], ks[9])
    w14, b14 = lin(ks[10], ks[11], 32, 1)
    return (w0, b0, w2, b2, w5, b5, w8, b8, w11, b11, w14, b14)


def to_kernel_params(raw):
    """Torch-layout params -> packed kernel layout.

    * Four hidden 32x32 weights (Linear(32,32) + three Conv1d(16,32,k=2)
      flattened contiguously over (in_channel, kernel), matching view(-1,16,2))
      packed into one lane-dense [32,128] bf16 slab (columns 32j:32(j+1)).
    * Small f32 params packed into [32,8]: cols 0-2 Linear(3,32) weight,
      col 3 its bias, cols 4-7 the four hidden biases.
    * Output layer kept separate: w14 [1,32] bf16, b14 [1,1] f32.
    """
    (w0, b0, w2, b2, w5, b5, w8, b8, w11, b11, w14, b14) = raw
    w_hid = jnp.concatenate(
        [w2, w5.reshape(32, 32), w8.reshape(32, 32), w11.reshape(32, 32)],
        axis=1).astype(jnp.bfloat16)                              # [32, 128]
    p_aux = jnp.concatenate(
        [w0, b0[:, None], b2[:, None], b5[:, None], b8[:, None], b11[:, None]],
        axis=1).astype(jnp.float32)                               # [32, 8]
    w_out = w14.astype(jnp.bfloat16)                              # [1, 32]
    b_out = b14[:, None].astype(jnp.float32)                      # [1, 1]
    return (w_hid, p_aux, w_out, b_out)


# ---------------------------------------------------------------------------
# References
# ---------------------------------------------------------------------------
def reference_forward_f32(x, raw):
    """Exact-f32 replica of the PyTorch forward (precision=HIGHEST dots)."""
    hp = lax.Precision.HIGHEST
    (w0, b0, w2, b2, w5, b5, w8, b8, w11, b11, w14, b14) = raw
    h = jnp.maximum(jnp.dot(x, w0.T, precision=hp) + b0, 0.0)
    h = jnp.maximum(jnp.dot(h, w2.T, precision=hp) + b2, 0.0)

    def conv_block(h, w, b):
        v = h.reshape(-1, 16, 2)                     # view(-1, 16, 2)
        y = jnp.einsum('bck,ock->bo', v, w, precision=hp) + b   # Conv1d k=2, L_out=1
        return jnp.maximum(y, 0.0)

    h = conv_block(h, w5, b5)
    h = conv_block(h, w8, b8)
    h = conv_block(h, w11, b11)
    h = h.reshape(h.shape[0], -1)                    # view(B, -1)
    return jax.nn.sigmoid(jnp.dot(h, w14.T, precision=hp) + b14)


def reference_forward_bf16(x, raw):
    """Reference mirroring the kernel arithmetic: f32 layer 0, bf16-operand
    matmuls with f32 accumulation, f32 bias/ReLU/sigmoid."""
    (w0, b0, w2, b2, w5, b5, w8, b8, w11, b11, w14, b14) = raw
    h = (x[:, 0:1] * w0[:, 0] + x[:, 1:2] * w0[:, 1] + x[:, 2:3] * w0[:, 2] + b0)
    h = jnp.maximum(h, 0.0)

    def hid(h, w_flat, b):
        y = jnp.dot(h.astype(jnp.bfloat16), w_flat.astype(jnp.bfloat16).T,
                    preferred_element_type=jnp.float32) + b
        return jnp.maximum(y, 0.0)

    h = hid(h, w2, b2)
    h = hid(h, w5.reshape(32, 32), b5)
    h = hid(h, w8.reshape(32, 32), b8)
    h = hid(h, w11.reshape(32, 32), b11)
    z = jnp.dot(h.astype(jnp.bfloat16), w14.astype(jnp.bfloat16).T,
                preferred_element_type=jnp.float32) + b14
    return jax.nn.sigmoid(z)


# ---------------------------------------------------------------------------
if __name__ == "__main__":
    key = jax.random.PRNGKey(0)
    k_param, k_x = jax.random.split(key)

    raw = init_raw_params(k_param)
    kparams = to_kernel_params(raw)

    # Small shape that still exercises tiling + padding + a multi-step grid:
    # B=300 (not a multiple of 128) -> TB=128, 3 pipelined "parallel" steps.
    B = 300
    x = jax.random.normal(k_x, (B, 3), jnp.float32)

    out = jax.block_until_ready(actual_custom_model_forward(x, kparams))
    assert out.shape == (B, 1)

    # (a) Tight check vs a reference mirroring the kernel arithmetic
    #     (verifies conv folding, packing and bias wiring).
    ref_bf16 = reference_forward_bf16(x, raw)
    np.testing.assert_allclose(np.asarray(out), np.asarray(ref_bf16),
                               rtol=5e-3, atol=5e-3)

    # (b) Looser check vs the exact-f32 PyTorch-equivalent forward; tolerance
    #     reflects bf16 matmul operands (f32 accumulation) in the kernel.
    ref_f32 = reference_forward_f32(x, raw)
    np.testing.assert_allclose(np.asarray(out), np.asarray(ref_f32),
                               rtol=2.5e-2, atol=2.5e-2)

    print("KERNEL_OK")
</pallas_src>

<mosaic_0001>
module attributes {stable_mosaic.version = 11 : i64} {
  func.func @_model_kernel(%arg0: i32, %arg1: memref<3x128xf32, #tpu.memory_space<vmem>>, %arg2: memref<32x128xbf16, #tpu.memory_space<vmem>>, %arg3: memref<32x8xf32, #tpu.memory_space<vmem>>, %arg4: memref<1x32xbf16, #tpu.memory_space<vmem>>, %arg5: memref<1x1xf32, #tpu.memory_space<vmem>>, %arg6: memref<1x128xf32, #tpu.memory_space<vmem>>) attributes {dimension_semantics = [#tpu.dimension_semantics<parallel>], iteration_bounds = array<i64: 3>, scalar_prefetch = 0 : i64, scratch_operands = 0 : i64, tpu.core_type = #tpu.core_type<tc>, window_params = [{transform_indices = @transform_0, window_bounds = array<i64: 3, 128>}, {pipeline_mode = #tpu.pipeline_mode<synchronous>, transform_indices = @transform_1, window_bounds = array<i64: 32, 128>}, {pipeline_mode = #tpu.pipeline_mode<synchronous>, transform_indices = @transform_2, window_bounds = array<i64: 32, 8>}, {pipeline_mode = #tpu.pipeline_mode<synchronous>, transform_indices = @transform_3, window_bounds = array<i64: 1, 32>}, {pipeline_mode = #tpu.pipeline_mode<synchronous>, transform_indices = @transform_4, window_bounds = array<i64: 1, 1>}, {transform_indices = @transform_5, window_bounds = array<i64: 1, 128>}]} {
    %c0 = arith.constant 0 : index
    %c0_0 = arith.constant 0 : index
    %0 = vector.load %arg3[%c0, %c0_0] : memref<32x8xf32, #tpu.memory_space<vmem>>, vector<32x8xf32>
    %c0_1 = arith.constant 0 : index
    %c0_2 = arith.constant 0 : index
    %1 = vector.load %arg1[%c0_1, %c0_2] : memref<3x128xf32, #tpu.memory_space<vmem>>, vector<3x128xf32>
    %2 = vector.extract_strided_slice %0 {offsets = [0, 0], sizes = [32, 1], strides = [1, 1]} : vector<32x8xf32> to vector<32x1xf32>
    %3 = vector.extract_strided_slice %1 {offsets = [0, 0], sizes = [1, 128], strides = [1, 1]} : vector<3x128xf32> to vector<1x128xf32>
    %4 = vector.broadcast %2 : vector<32x1xf32> to vector<32x128xf32>
    %5 = vector.broadcast %3 : vector<1x128xf32> to vector<32x128xf32>
    %6 = arith.mulf %4, %5 : vector<32x128xf32>
    %7 = vector.extract_strided_slice %0 {offsets = [0, 1], sizes = [32, 1], strides = [1, 1]} : vector<32x8xf32> to vector<32x1xf32>
    %8 = vector.extract_strided_slice %1 {offsets = [1, 0], sizes = [1, 128], strides = [1, 1]} : vector<3x128xf32> to vector<1x128xf32>
    %9 = vector.broadcast %7 : vector<32x1xf32> to vector<32x128xf32>
    %10 = vector.broadcast %8 : vector<1x128xf32> to vector<32x128xf32>
    %11 = arith.mulf %9, %10 : vector<32x128xf32>
    %12 = arith.addf %6, %11 : vector<32x128xf32>
    %13 = vector.extract_strided_slice %0 {offsets = [0, 2], sizes = [32, 1], strides = [1, 1]} : vector<32x8xf32> to vector<32x1xf32>
    %14 = vector.extract_strided_slice %1 {offsets = [2, 0], sizes = [1, 128], strides = [1, 1]} : vector<3x128xf32> to vector<1x128xf32>
    %15 = vector.broadcast %13 : vector<32x1xf32> to vector<32x128xf32>
    %16 = vector.broadcast %14 : vector<1x128xf32> to vector<32x128xf32>
    %17 = arith.mulf %15, %16 : vector<32x128xf32>
    %18 = arith.addf %12, %17 : vector<32x128xf32>
    %19 = vector.extract_strided_slice %0 {offsets = [0, 3], sizes = [32, 1], strides = [1, 1]} : vector<32x8xf32> to vector<32x1xf32>
    %20 = vector.broadcast %19 : vector<32x1xf32> to vector<32x128xf32>
    %21 = arith.addf %18, %20 : vector<32x128xf32>
    %cst = arith.constant 0.000000e+00 : f32
    %22 = vector.broadcast %cst : f32 to vector<32x128xf32>
    %23 = arith.maximumf %21, %22 : vector<32x128xf32>
    %c0_3 = arith.constant 0 : index
    %c0_4 = arith.constant 0 : index
    %24 = vector.load %arg2[%c0_3, %c0_4] : memref<32x128xbf16, #tpu.memory_space<vmem>>, vector<32x32xbf16>
    %25 = arith.truncf %23 : vector<32x128xf32> to vector<32x128xbf16>
    %cst_5 = arith.constant dense<0.000000e+00> : vector<32x128xf32>
    %26 = tpu.matmul %24, %25, %cst_5 {dimension_numbers = #tpu.dot_dimension_numbers<[1], [0], [0], [1], [0, 0, 1, 1], [], []>} : vector<32x32xbf16>, vector<32x128xbf16>, vector<32x128xf32> -> vector<32x128xf32>
    %27 = vector.extract_strided_slice %0 {offsets = [0, 4], sizes = [32, 1], strides = [1, 1]} : vector<32x8xf32> to vector<32x1xf32>
    %28 = vector.broadcast %27 : vector<32x1xf32> to vector<32x128xf32>
    %29 = arith.addf %26, %28 : vector<32x128xf32>
    %cst_6 = arith.constant 0.000000e+00 : f32
    %30 = vector.broadcast %cst_6 : f32 to vector<32x128xf32>
    %31 = arith.maximumf %29, %30 : vector<32x128xf32>
    %c0_7 = arith.constant 0 : index
    %c32 = arith.constant 32 : index
    %32 = vector.load %arg2[%c0_7, %c32] : memref<32x128xbf16, #tpu.memory_space<vmem>>, vector<32x32xbf16>
    %33 = arith.truncf %31 : vector<32x128xf32> to vector<32x128xbf16>
    %cst_8 = arith.constant dense<0.000000e+00> : vector<32x128xf32>
    %34 = tpu.matmul %32, %33, %cst_8 {dimension_numbers = #tpu.dot_dimension_numbers<[1], [0], [0], [1], [0, 0, 1, 1], [], []>} : vector<32x32xbf16>, vector<32x128xbf16>, vector<32x128xf32> -> vector<32x128xf32>
    %35 = vector.extract_strided_slice %0 {offsets = [0, 5], sizes = [32, 1], strides = [1, 1]} : vector<32x8xf32> to vector<32x1xf32>
    %36 = vector.broadcast %35 : vector<32x1xf32> to vector<32x128xf32>
    %37 = arith.addf %34, %36 : vector<32x128xf32>
    %cst_9 = arith.constant 0.000000e+00 : f32
    %38 = vector.broadcast %cst_9 : f32 to vector<32x128xf32>
    %39 = arith.maximumf %37, %38 : vector<32x128xf32>
    %c0_10 = arith.constant 0 : index
    %c64 = arith.constant 64 : index
    %40 = vector.load %arg2[%c0_10, %c64] : memref<32x128xbf16, #tpu.memory_space<vmem>>, vector<32x32xbf16>
    %41 = arith.truncf %39 : vector<32x128xf32> to vector<32x128xbf16>
    %cst_11 = arith.constant dense<0.000000e+00> : vector<32x128xf32>
    %42 = tpu.matmul %40, %41, %cst_11 {dimension_numbers = #tpu.dot_dimension_numbers<[1], [0], [0], [1], [0, 0, 1, 1], [], []>} : vector<32x32xbf16>, vector<32x128xbf16>, vector<32x128xf32> -> vector<32x128xf32>
    %43 = vector.extract_strided_slice %0 {offsets = [0, 6], sizes = [32, 1], strides = [1, 1]} : vector<32x8xf32> to vector<32x1xf32>
    %44 = vector.broadcast %43 : vector<32x1xf32> to vector<32x128xf32>
    %45 = arith.addf %42, %44 : vector<32x128xf32>
    %cst_12 = arith.constant 0.000000e+00 : f32
    %46 = vector.broadcast %cst_12 : f32 to vector<32x128xf32>
    %47 = arith.maximumf %45, %46 : vector<32x128xf32>
    %c0_13 = arith.constant 0 : index
    %c96 = arith.constant 96 : index
    %48 = vector.load %arg2[%c0_13, %c96] : memref<32x128xbf16, #tpu.memory_space<vmem>>, vector<32x32xbf16>
    %49 = arith.truncf %47 : vector<32x128xf32> to vector<32x128xbf16>
    %cst_14 = arith.constant dense<0.000000e+00> : vector<32x128xf32>
    %50 = tpu.matmul %48, %49, %cst_14 {dimension_numbers = #tpu.dot_dimension_numbers<[1], [0], [0], [1], [0, 0, 1, 1], [], []>} : vector<32x32xbf16>, vector<32x128xbf16>, vector<32x128xf32> -> vector<32x128xf32>
    %51 = vector.extract_strided_slice %0 {offsets = [0, 7], sizes = [32, 1], strides = [1, 1]} : vector<32x8xf32> to vector<32x1xf32>
    %52 = vector.broadcast %51 : vector<32x1xf32> to vector<32x128xf32>
    %53 = arith.addf %50, %52 : vector<32x128xf32>
    %cst_15 = arith.constant 0.000000e+00 : f32
    %54 = vector.broadcast %cst_15 : f32 to vector<32x128xf32>
    %55 = arith.maximumf %53, %54 : vector<32x128xf32>
    %c0_16 = arith.constant 0 : index
    %c0_17 = arith.constant 0 : index
    %56 = vector.load %arg4[%c0_16, %c0_17] : memref<1x32xbf16, #tpu.memory_space<vmem>>, vector<1x32xbf16>
    %57 = arith.truncf %55 : vector<32x128xf32> to vector<32x128xbf16>
    %cst_18 = arith.constant dense<0.000000e+00> : vector<1x128xf32>
    %58 = tpu.matmul %56, %57, %cst_18 {dimension_numbers = #tpu.dot_dimension_numbers<[1], [0], [0], [1], [0, 0, 1, 1], [], []>} : vector<1x32xbf16>, vector<32x128xbf16>, vector<1x128xf32> -> vector<1x128xf32>
    %c0_19 = arith.constant 0 : index
    %c0_20 = arith.constant 0 : index
    %59 = vector.load %arg5[%c0_19, %c0_20] : memref<1x1xf32, #tpu.memory_space<vmem>>, vector<1x1xf32>
    %60 = vector.broadcast %59 : vector<1x1xf32> to vector<1x128xf32>
    %61 = arith.addf %58, %60 : vector<1x128xf32>
    %62 = arith.negf %61 : vector<1x128xf32>
    %63 = math.exp %62 : vector<1x128xf32>
    %cst_21 = arith.constant 1.000000e+00 : f32
    %64 = vector.broadcast %cst_21 : f32 to vector<1x128xf32>
    %65 = arith.addf %64, %63 : vector<1x128xf32>
    %66 = arith.divf %64, %65 : vector<1x128xf32>
    %c0_22 = arith.constant 0 : index
    %c0_23 = arith.constant 0 : index
    %67 = vector.load %arg6[%c0_22, %c0_23] : memref<1x128xf32, #tpu.memory_space<vmem>>, vector<1x128xf32>
    tpu.vector_store %arg6[%c0_22, %c0_23], %66 {strides = array<i32>} : memref<1x128xf32, #tpu.memory_space<vmem>>, vector<1x128xf32>,
    return
  }
  func.func @transform_0(%arg0: i32) -> (i32, i32) {
    %c0_i32 = arith.constant 0 : i32
    %c0_i32_0 = arith.constant 0 : i32
    return %c0_i32, %arg0 : i32, i32
  }
  func.func @transform_1(%arg0: i32) -> (i32, i32) {
    %c0_i32 = arith.constant 0 : i32
    %c0_i32_0 = arith.constant 0 : i32
    %c0_i32_1 = arith.constant 0 : i32
    return %c0_i32, %c0_i32_0 : i32, i32
  }
  func.func @transform_2(%arg0: i32) -> (i32, i32) {
    %c0_i32 = arith.constant 0 : i32
    %c0_i32_0 = arith.constant 0 : i32
    %c0_i32_1 = arith.constant 0 : i32
    return %c0_i32, %c0_i32_0 : i32, i32
  }
  func.func @transform_3(%arg0: i32) -> (i32, i32) {
    %c0_i32 = arith.constant 0 : i32
    %c0_i32_0 = arith.constant 0 : i32
    %c0_i32_1 = arith.constant 0 : i32
    return %c0_i32, %c0_i32_0 : i32, i32
  }
  func.func @transform_4(%arg0: i32) -> (i32, i32) {
    %c0_i32 = arith.constant 0 : i32
    %c0_i32_0 = arith.constant 0 : i32
    %c0_i32_1 = arith.constant 0 : i32
    return %c0_i32, %c0_i32_0 : i32, i32
  }
  func.func @transform_5(%arg0: i32) -> (i32, i32) {
    %c0_i32 = arith.constant 0 : i32
    %c0_i32_0 = arith.constant 0 : i32
    return %c0_i32, %arg0 : i32, i32
  }
}

</mosaic_0001>

<llo_original>
// kernel: tpu_custom_call.1
$region0: #{tpu_custom_call.1}
  #allocation0 [shape = 'u32[]', space=smem, size = 0x4, offset = 0x4, fixed_abs, tag = 'smem constant byte address 0x4 - core index']
  #allocation1 [shape = 'u32[72,128]{1,0:T(1,128)}', space=vmem, size = 0x9000, scoped, tag = 'internal scratch']
  #allocation2 [shape = 'f32[1,1]{1,0:T(1,128)S(1)}', space=vmem, size = 0x200, scoped, tag = 'scoped memory for tpu_custom_call.1']
  %s0 = inlined_call_operand.vmem [shape: f32[3,384], index: 0, kind: input, shape index: {}]
  %s1 = inlined_call_operand.vmem [shape: bf16[32,128], index: 1, kind: input, shape index: {}]
  %s2 = inlined_call_operand.vmem [shape: f32[32,8], index: 2, kind: input, shape index: {}]
  %s3 = inlined_call_operand.vmem [shape: bf16[1,32], index: 3, kind: input, shape index: {}]
  %s4 = inlined_call_operand.<no memory space> [shape: f32[1,1], index: 4, kind: input, shape index: {}]
  %s5 = inlined_call_operand.hbm [shape: f32[1,384], index: 5, kind: output, shape index: {}]
  %s6 = sld [smem:[#allocation0]]
  $region53: #{tpu_custom_call.1} parent=0
    _
  %s8 = ssub.s32 1, %s6
  %s9 = scalar_select 0, %s8, %s6
  %v10 = vstv %s4
  %11 = vst [vmem:[#allocation2] sm:$0x1] %v10
  $region1: #{tpu_custom_call.1} parent=0
    #allocation3 [shape = 'u8[1024]{0}', space=vmem, size = 0x400, scoped, tag = 'output window, operand 0']
    #allocation4 [shape = 's32[2]{0}', space=sflag, size = 0x8, scoped, tag = 'scoped memory for tpu_custom_call.1']
    %12 = vsyncpa [#allocation4], 0
    %s13 = scalar_lea.sflag [#allocation4], 1
    %14 = vsyncpa %s13, 0
    loop: start=0, step=1, limit=5
    $region2: #{tpu_custom_call.1} parent=1 // loop_pre_header
      _
    $region3: #{tpu_custom_call.1} parent=1 // loop_header
      %s16 = sphi 0, %s20
      %p17 = scmp.ge.s32.totalorder %s16, 5
      %s26 = sphi 0, %s28
      %s29 = sphi 0, %s26
      %s30 = sphi 0, %s29
      %s46 = sphi 0, %s30
      %s50 = sphi 0, %s50
      %s52 = sphi 0, %s50
      %s53 = sphi 0, %s52
      %s67 = sphi 0, %s53
      %s71 = sphi 0, %s71
      %s73 = sphi 0, %s71
      %s74 = sphi 0, %s73
      %s88 = sphi 0, %s74
      %s92 = sphi 0, %s92
      %s94 = sphi 0, %s92
      %s95 = sphi 0, %s94
      %s109 = sphi 0, %s95
      %s113 = sphi 0, %s113
      %s115 = sphi 0, %s113
      %s116 = sphi 0, %s115
      %s130 = sphi 0, %s116
      %s136 = sphi 0, %s138
      %s139 = sphi 0, %s136
      %s140 = sphi 0, %s139
      %s156 = sphi 0, %s140
    $region4: #{tpu_custom_call.1} parent=1 // loop_header_branch
      %19 = sbr.rel (%p17) target = $region8
    $region5: #{tpu_custom_call.1} parent=1 // loop_body
      %s21 = ssub.s32 %s16, 1
      %s22 = ssub.s32 %s16, 2
      %s23 = sadd.s32 %s16, 1
      %s24 = ssub.s32 %s16, %s23
      %p25 = scmp.eq.s32.totalorder %s24, 0
      %s27 = sadd.s32 %s26, 1
      %s28 = scalar_select %p25, %s26, %s27
      %p31 = pneg %p25
      %p32 = scmp.eq.s32.totalorder %s16, 2
      %p33 = por %p31, %p32
      %p34 = scmp.ne.s32.totalorder %s26, %s29
      %p35 = scmp.eq.s32.totalorder %s16, 0
      %p36 = por %p34, %p35
      %p37 = scmp.ne.s32.totalorder %s26, %s29
      %p38 = scmp.eq.s32.totalorder %s21, 2
      %p39 = por %p37, %p38
      %p40 = scmp.ne.s32.totalorder %s29, %s30
      %p41 = scmp.eq.s32.totalorder %s21, 0
      %p42 = por %p40, %p41
      %p43 = scmp.ne.s32.totalorder %s29, %s30
      %p44 = scmp.eq.s32.totalorder %s22, 2
      %p45 = por %p43, %p44
      %p47 = scmp.ne.s32.totalorder %s30, %s46
      %p48 = scmp.eq.s32.totalorder %s22, 0
      %p49 = por %p47, %p48
      %s51 = sadd.s32 %s50, 1
      %p54 = scmp.eq.s32.totalorder %s16, 2
      %p55 = scmp.ne.s32.totalorder %s50, %s52
      %p56 = scmp.eq.s32.totalorder %s16, 0
      %p57 = por %p55, %p56
      %p58 = scmp.ne.s32.totalorder %s50, %s52
      %p59 = scmp.eq.s32.totalorder %s21, 2
      %p60 = por %p58, %p59
      %p61 = scmp.ne.s32.totalorder %s52, %s53
      %p62 = scmp.eq.s32.totalorder %s21, 0
      %p63 = por %p61, %p62
      %p64 = scmp.ne.s32.totalorder %s52, %s53
      %p65 = scmp.eq.s32.totalorder %s22, 2
      %p66 = por %p64, %p65
      %p68 = scmp.ne.s32.totalorder %s53, %s67
      %p69 = scmp.eq.s32.totalorder %s22, 0
      %p70 = por %p68, %p69
      %s72 = sadd.s32 %s71, 1
      %p75 = scmp.eq.s32.totalorder %s16, 2
      %p76 = scmp.ne.s32.totalorder %s71, %s73
      %p77 = scmp.eq.s32.totalorder %s16, 0
      %p78 = por %p76, %p77
      %p79 = scmp.ne.s32.totalorder %s71, %s73
      %p80 = scmp.eq.s32.totalorder %s21, 2
      %p81 = por %p79, %p80
      %p82 = scmp.ne.s32.totalorder %s73, %s74
      %p83 = scmp.eq.s32.totalorder %s21, 0
      %p84 = por %p82, %p83
      %p85 = scmp.ne.s32.totalorder %s73, %s74
      %p86 = scmp.eq.s32.totalorder %s22, 2
      %p87 = por %p85, %p86
      %p89 = scmp.ne.s32.totalorder %s74, %s88
      %p90 = scmp.eq.s32.totalorder %s22, 0
      %p91 = por %p89, %p90
      %s93 = sadd.s32 %s92, 1
      %p96 = scmp.eq.s32.totalorder %s16, 2
      %p97 = scmp.ne.s32.totalorder %s92, %s94
      %p98 = scmp.eq.s32.totalorder %s16, 0
      %p99 = por %p97, %p98
      %p100 = scmp.ne.s32.totalorder %s92, %s94
      %p101 = scmp.eq.s32.totalorder %s21, 2
      %p102 = por %p100, %p101
      %p103 = scmp.ne.s32.totalorder %s94, %s95
      %p104 = scmp.eq.s32.totalorder %s21, 0
      %p105 = por %p103, %p104
      %p106 = scmp.ne.s32.totalorder %s94, %s95
      %p107 = scmp.eq.s32.totalorder %s22, 2
      %p108 = por %p106, %p107
      %p110 = scmp.ne.s32.totalorder %s95, %s109
      %p111 = scmp.eq.s32.totalorder %s22, 0
      %p112 = por %p110, %p111
      %s114 = sadd.s32 %s113, 1
      %p117 = scmp.eq.s32.totalorder %s16, 2
      %p118 = scmp.ne.s32.totalorder %s113, %s115
      %p119 = scmp.eq.s32.totalorder %s16, 0
      %p120 = por %p118, %p119
      %p121 = scmp.ne.s32.totalorder %s113, %s115
      %p122 = scmp.eq.s32.totalorder %s21, 2
      %p123 = por %p121, %p122
      %p124 = scmp.ne.s32.totalorder %s115, %s116
      %p125 = scmp.eq.s32.totalorder %s21, 0
      %p126 = por %p124, %p125
      %p127 = scmp.ne.s32.totalorder %s115, %s116
      %p128 = scmp.eq.s32.totalorder %s22, 2
      %p129 = por %p127, %p128
      %p131 = scmp.ne.s32.totalorder %s116, %s130
      %p132 = scmp.eq.s32.totalorder %s22, 0
      %p133 = por %p131, %p132
      %s134 = ssub.s32 %s16, %s23
      %p135 = scmp.eq.s32.totalorder %s134, 0
      %s137 = sadd.s32 %s136, 1
      %s138 = scalar_select %p135, %s136, %s137
      %p141 = pneg %p135
      %p142 = scmp.eq.s32.totalorder %s16, 2
      %p143 = por %p141, %p142
      %p144 = scmp.ne.s32.totalorder %s136, %s139
      %p145 = scmp.eq.s32.totalorder %s16, 0
      %p146 = por %p144, %p145
      %p147 = scmp.ne.s32.totalorder %s136, %s139
      %p148 = scmp.eq.s32.totalorder %s21, 2
      %p149 = por %p147, %p148
      %p150 = scmp.ne.s32.totalorder %s139, %s140
      %p151 = scmp.eq.s32.totalorder %s21, 0
      %p152 = por %p150, %p151
      %p153 = scmp.ne.s32.totalorder %s139, %s140
      %p154 = scmp.eq.s32.totalorder %s22, 2
      %p155 = por %p153, %p154
      %p157 = scmp.ne.s32.totalorder %s140, %s156
      %p158 = scmp.eq.s32.totalorder %s22, 0
      %p159 = por %p157, %p158
      %p160 = scmp.le.s32.totalorder 1, %s16
      %p161 = scmp.lt.s32.totalorder %s16, 4
      %p162 = pnand %p160, %p161
      %p163 = pneg %p162
      // Predicated region
      $region9: #{tpu_custom_call.1} parent=5 // pred_check
        _
      $region10: #{tpu_custom_call.1} parent=5 // pred_check_branch
        %165 = sbr.rel (%p162) target = $region12
      $region11: #{tpu_custom_call.1} parent=5 // pred_region
        %s166 = ssub.s32 %s16, 1
        // Predicated region
        $region13: #{tpu_custom_call.1} parent=11 // pred_check
          %p167 = pneg %p63
        $region14: #{tpu_custom_call.1} parent=11 // pred_check_branch
          %169 = sbr.rel (%p167) target = $region16
        $region15: #{tpu_custom_call.1} parent=11 // pred_region
          _
        $region16: #{tpu_custom_call.1} parent=11 // pred_fallthru
          _
        // Predicated region
        $region17: #{tpu_custom_call.1} parent=11 // pred_check
          %p170 = pneg %p84
        $region18: #{tpu_custom_call.1} parent=11 // pred_check_branch
          %172 = sbr.rel (%p170) target = $region20
        $region19: #{tpu_custom_call.1} parent=11 // pred_region
          _
        $region20: #{tpu_custom_call.1} parent=11 // pred_fallthru
          _
        // Predicated region
        $region21: #{tpu_custom_call.1} parent=11 // pred_check
          %p173 = pneg %p105
        $region22: #{tpu_custom_call.1} parent=11 // pred_check_branch
          %175 = sbr.rel (%p173) target = $region24
        $region23: #{tpu_custom_call.1} parent=11 // pred_region
          _
        $region24: #{tpu_custom_call.1} parent=11 // pred_fallthru
          _
        // Predicated region
        $region25: #{tpu_custom_call.1} parent=11 // pred_check
          %p176 = pneg %p126
        $region26: #{tpu_custom_call.1} parent=11 // pred_check_branch
          %178 = sbr.rel (%p176) target = $region28
        $region27: #{tpu_custom_call.1} parent=11 // pred_region
          _
        $region28: #{tpu_custom_call.1} parent=11 // pred_fallthru
          _
      $region12: #{tpu_custom_call.1} parent=5 // pred_fallthru
        _
      %p179 = scmp.lt.s32.totalorder %s16, 3
      // Predicated region
      $region29: #{tpu_custom_call.1} parent=5 // pred_check
        %p180 = pneg %p179
      $region30: #{tpu_custom_call.1} parent=5 // pred_check_branch
        %182 = sbr.rel (%p180) target = $region32
      $region31: #{tpu_custom_call.1} parent=5 // pred_region
        // Predicated region
        $region33: #{tpu_custom_call.1} parent=31 // pred_check
          %p183 = pneg %p36
        $region34: #{tpu_custom_call.1} parent=31 // pred_check_branch
          %185 = sbr.rel (%p183) target = $region36
        $region35: #{tpu_custom_call.1} parent=31 // pred_region
          %p186 = scmp.lt.s32.totalorder %s16, 2
          %s187 = scalar_select %p186, %s16, 2
          %s188 = smul.addr %s187, 4
          %s189 = scalar_lea.vmem %s0, %s188
        $region36: #{tpu_custom_call.1} parent=31 // pred_fallthru
          _
      $region32: #{tpu_custom_call.1} parent=5 // pred_fallthru
        _
      %p190 = scmp.le.s32.totalorder 1, %s16
      %p191 = scmp.lt.s32.totalorder %s16, 4
      %p192 = pnand %p190, %p191
      %p193 = pneg %p192
      // Predicated region
      $region37: #{tpu_custom_call.1} parent=5 // pred_check
        _
      $region38: #{tpu_custom_call.1} parent=5 // pred_check_branch
        %195 = sbr.rel (%p192) target = $region40
      $region39: #{tpu_custom_call.1} parent=5 // pred_region
        %s196 = ssub.s32 %s16, 1
        %p197 = scmp.lt.s32.totalorder %s21, 2
        %s198 = scalar_select %p197, %s21, 2
        %s199 = smul.addr %s198, 4
        %s200 = scalar_lea.vmem %s0, %s199
        %p201 = pneg %p42
        %p202 = pneg %p39
        %p203 = pneg %p63
        %p204 = pneg %p60
        %p205 = pneg %p84
        %p206 = pneg %p81
        %p207 = pneg %p105
        %p208 = pneg %p102
        %p209 = pneg %p126
        %p210 = pneg %p123
        %p211 = pneg %p152
        %p212 = pneg %p149
        %s213 = sand.u32 %s139, 1
        %s214 = scalar_lea.sflag [#allocation4], %s213
        %s215 = sand.u32 %s139, 1
        %s216 = scalar_lea.vmem [#allocation3], %s215
        %p217 = scmp.lt.s32.totalorder %s21, 2
        %s218 = scalar_select %p217, %s21, 2
        %s219 = smul.addr %s218, 4
        %s220 = scalar_lea.vmem %s0, %s219
        %v222 = vld [vmem:[%s2] sm:$0xff]
        %v223 = vld [vmem:[%s2 + $0x8] sm:$0xff]
        %v224 = vld [vmem:[%s2 + $0x10] sm:$0xff]
        %v225 = vld [vmem:[%s2 + $0x18] sm:$0xff]
        %v226 = vld [vmem:[%s220] sm:$0x7]
        %228 = vset.pattern.permute.xlu0 0
        %229 = vperm.xlu0 %228, %v222
        %v230 = vpop.permute.xlu0 %229
        %233 = vset.pattern.permute.xlu0 0
        %234 = vperm.xlu0 %233, %v223
        %v235 = vpop.permute.xlu0 %234
        %238 = vset.pattern.permute.xlu0 0
        %239 = vperm.xlu0 %238, %v224
        %v240 = vpop.permute.xlu0 %239
        %243 = vset.pattern.permute.xlu0 0
        %244 = vperm.xlu0 %243, %v225
        %v245 = vpop.permute.xlu0 %244
        %v247 = vperm.slane %v226, 0
        %v248 = vmul.f32 %v230, %v247
        %v249 = vmul.f32 %v235, %v247
        %v250 = vmul.f32 %v240, %v247
        %v251 = vmul.f32 %v245, %v247
        %252 = vset.pattern.permute.xlu0 1
        %253 = vperm.xlu0 %252, %v222
        %v254 = vpop.permute.xlu0 %253
        %256 = vset.pattern.permute.xlu0 1
        %257 = vperm.xlu0 %256, %v223
        %v258 = vpop.permute.xlu0 %257
        %260 = vset.pattern.permute.xlu0 1
        %261 = vperm.xlu0 %260, %v224
        %v262 = vpop.permute.xlu0 %261
        %264 = vset.pattern.permute.xlu0 1
        %265 = vperm.xlu0 %264, %v225
        %v266 = vpop.permute.xlu0 %265
        %v268 = vperm.slane %v226, 1
        %v269 = vmul.f32 %v254, %v268
        %v270 = vmul.f32 %v258, %v268
        %v271 = vmul.f32 %v262, %v268
        %v272 = vmul.f32 %v266, %v268
        %v273 = vadd.f32 %v248, %v269
        %v274 = vadd.f32 %v249, %v270
        %v275 = vadd.f32 %v250, %v271
        %v276 = vadd.f32 %v251, %v272
        %277 = vset.pattern.permute.xlu0 2
        %278 = vperm.xlu0 %277, %v222
        %v279 = vpop.permute.xlu0 %278
        %281 = vset.pattern.permute.xlu0 2
        %282 = vperm.xlu0 %281, %v223
        %v283 = vpop.permute.xlu0 %282
        %285 = vset.pattern.permute.xlu0 2
        %286 = vperm.xlu0 %285, %v224
        %v287 = vpop.permute.xlu0 %286
        %289 = vset.pattern.permute.xlu0 2
        %290 = vperm.xlu0 %289, %v225
        %v291 = vpop.permute.xlu0 %290
        %v293 = vperm.slane %v226, 2
        %v294 = vmul.f32 %v279, %v293
        %v295 = vmul.f32 %v283, %v293
        %v296 = vmul.f32 %v287, %v293
        %v297 = vmul.f32 %v291, %v293
        %v298 = vadd.f32 %v273, %v294
        %v299 = vadd.f32 %v274, %v295
        %v300 = vadd.f32 %v275, %v296
        %v301 = vadd.f32 %v276, %v297
        %302 = vset.pattern.permute.xlu0 3
        %303 = vperm.xlu0 %302, %v222
        %v304 = vpop.permute.xlu0 %303
        %306 = vset.pattern.permute.xlu0 3
        %307 = vperm.xlu0 %306, %v223
        %v308 = vpop.permute.xlu0 %307
        %310 = vset.pattern.permute.xlu0 3
        %311 = vperm.xlu0 %310, %v224
        %v312 = vpop.permute.xlu0 %311
        %314 = vset.pattern.permute.xlu0 3
        %315 = vperm.xlu0 %314, %v225
        %v316 = vpop.permute.xlu0 %315
        %v318 = vadd.f32 %v298, %v304
        %v319 = vadd.f32 %v299, %v308
        %v320 = vadd.f32 %v300, %v312
        %v321 = vadd.f32 %v301, %v316
        %v322 = vmax.f32 %v318, 0.0
        %v323 = vmax.f32 %v319, 0.0
        %v324 = vmax.f32 %v320, 0.0
        %v325 = vmax.f32 %v321, 0.0
        %v326 = vld [vmem:[%s1] sm:$0xf]
        %v327 = vld [vmem:[%s1 + $0x4] sm:$0xf]
        %v328 = vld [vmem:[%s1 + $0x8] sm:$0xf]
        %v329 = vld [vmem:[%s1 + $0xc] sm:$0xf]
        %v330 = vpack.c.bf16 %v323, %v322
        %v331 = vpack.c.bf16 %v325, %v324
        %332 = vset.pattern.permute.xlu0 4
        %333 = vperm.xlu0 %332, %v222
        %v334 = vpop.permute.xlu0 %333
        %336 = vset.pattern.permute.xlu0 4
        %337 = vperm.xlu0 %336, %v223
        %v338 = vpop.permute.xlu0 %337
        %340 = vset.pattern.permute.xlu0 4
        %341 = vperm.xlu0 %340, %v224
        %v342 = vpop.permute.xlu0 %341
        %344 = vset.pattern.permute.xlu0 4
        %345 = vperm.xlu0 %344, %v225
        %v346 = vpop.permute.xlu0 %345
        %v352 = vunpack.c.l.b16 %v326
        %v353 = vunpack.c.l.b16 %v327
        %v354 = vunpack.c.l.b16 %v328
        %v355 = vunpack.c.l.b16 %v329
        %v356 = vpack.c.b16 %v353, %v352
        %v357 = vpack.c.b16 %v355, %v354
        %vm358 = vcmask 261120
        %v360 = vsel %vm358, %v356, 0
        %v363 = vsel %vm358, %v357, 0
        %365 = vmatpush.bf16.msra.mxu0 0
        %366 = vmatpush.bf16.msra.mxu0 0
        %367 = vmatpush.bf16.msra.mxu0 0
        %368 = vmatpush.bf16.msra.mxu0 0
        %369 = vmatpush.bf16.msra.mxu0 0
        %370 = vmatpush.bf16.msra.mxu0 0
        %371 = vmatpush.bf16.msra.mxu0 %v331
        %372 = vmatpush.bf16.msra.mxu0 %v330
        %373 = vmatmul.bf16.gmra.mxu0 %v360
        %v374 = vpop.f32.mrf.mxu0
        %v375 = vadd.f32 %v334, %v374
        %v376 = vpop.f32.mrf.mxu0
        %v377 = vadd.f32 %v338, %v376
        %378 = vmatmul.bf16.gmra.mxu0 %v363
        %v379 = vpop.f32.mrf.mxu0
        %v380 = vadd.f32 %v342, %v379
        %v381 = vpop.f32.mrf.mxu0
        %v382 = vadd.f32 %v346, %v381
        %383 = vdwg.mxu0
        %v384 = vmax.f32 %v375, 0.0
        %v385 = vmax.f32 %v377, 0.0
        %v386 = vmax.f32 %v380, 0.0
        %v387 = vmax.f32 %v382, 0.0
        %v388 = vpack.c.bf16 %v385, %v384
        %v389 = vpack.c.bf16 %v387, %v386
        %390 = vset.pattern.permute.xlu0 5
        %391 = vperm.xlu0 %390, %v222
        %v392 = vpop.permute.xlu0 %391
        %394 = vset.pattern.permute.xlu0 5
        %395 = vperm.xlu0 %394, %v223
        %v396 = vpop.permute.xlu0 %395
        %398 = vset.pattern.permute.xlu0 5
        %399 = vperm.xlu0 %398, %v224
        %v400 = vpop.permute.xlu0 %399
        %402 = vset.pattern.permute.xlu0 5
        %403 = vperm.xlu0 %402, %v225
        %v404 = vpop.permute.xlu0 %403
        %406 = vrot.lane.b32.xlu0 %v356, 96
        %v407 = vpop.permute.xlu0 %406
        %408 = vrot.lane.b32.xlu0 %v357, 96
        %v409 = vpop.permute.xlu0 %408
        %v411 = vsel %vm358, %v407, 0
        %v414 = vsel %vm358, %v409, 0
        %416 = vmatpush.bf16.msra.mxu0 0
        %417 = vmatpush.bf16.msra.mxu0 0
        %418 = vmatpush.bf16.msra.mxu0 0
        %419 = vmatpush.bf16.msra.mxu0 0
        %420 = vmatpush.bf16.msra.mxu0 0
        %421 = vmatpush.bf16.msra.mxu0 0
        %422 = vmatpush.bf16.msra.mxu0 %v389
        %423 = vmatpush.bf16.msra.mxu0 %v388
        %424 = vmatmul.bf16.gmra.mxu0 %v411
        %v425 = vpop.f32.mrf.mxu0
        %v426 = vadd.f32 %v392, %v425
        %v427 = vpop.f32.mrf.mxu0
        %v428 = vadd.f32 %v396, %v427
        %429 = vmatmul.bf16.gmra.mxu0 %v414
        %v430 = vpop.f32.mrf.mxu0
        %v431 = vadd.f32 %v400, %v430
        %v432 = vpop.f32.mrf.mxu0
        %v433 = vadd.f32 %v404, %v432
        %434 = vdwg.mxu0
        %v435 = vmax.f32 %v426, 0.0
        %v436 = vmax.f32 %v428, 0.0
        %v437 = vmax.f32 %v431, 0.0
        %v438 = vmax.f32 %v433, 0.0
        %v439 = vpack.c.bf16 %v436, %v435
        %v440 = vpack.c.bf16 %v438, %v437
        %441 = vset.pattern.permute.xlu0 6
        %442 = vperm.xlu0 %441, %v222
        %v443 = vpop.permute.xlu0 %442
        %445 = vset.pattern.permute.xlu0 6
        %446 = vperm.xlu0 %445, %v223
        %v447 = vpop.permute.xlu0 %446
        %449 = vset.pattern.permute.xlu0 6
        %450 = vperm.xlu0 %449, %v224
        %v451 = vpop.permute.xlu0 %450
        %453 = vset.pattern.permute.xlu0 6
        %454 = vperm.xlu0 %453, %v225
        %v455 = vpop.permute.xlu0 %454
        %457 = vrot.lane.b32.xlu0 %v356, 64
        %v458 = vpop.permute.xlu0 %457
        %459 = vrot.lane.b32.xlu0 %v357, 64
        %v460 = vpop.permute.xlu0 %459
        %v462 = vsel %vm358, %v458, 0
        %v465 = vsel %vm358, %v460, 0
        %467 = vmatpush.bf16.msra.mxu0 0
        %468 = vmatpush.bf16.msra.mxu0 0
        %469 = vmatpush.bf16.msra.mxu0 0
        %470 = vmatpush.bf16.msra.mxu0 0
        %471 = vmatpush.bf16.msra.mxu0 0
        %472 = vmatpush.bf16.msra.mxu0 0
        %473 = vmatpush.bf16.msra.mxu0 %v440
        %474 = vmatpush.bf16.msra.mxu0 %v439
        %475 = vmatmul.bf16.gmra.mxu0 %v462
        %v476 = vpop.f32.mrf.mxu0
        %v477 = vadd.f32 %v443, %v476
        %v478 = vpop.f32.mrf.mxu0
        %v479 = vadd.f32 %v447, %v478
        %480 = vmatmul.bf16.gmra.mxu0 %v465
        %v481 = vpop.f32.mrf.mxu0
        %v482 = vadd.f32 %v451, %v481
        %v483 = vpop.f32.mrf.mxu0
        %v484 = vadd.f32 %v455, %v483
        %485 = vdwg.mxu0
        %v486 = vmax.f32 %v477, 0.0
        %v487 = vmax.f32 %v479, 0.0
        %v488 = vmax.f32 %v482, 0.0
        %v489 = vmax.f32 %v484, 0.0
        %v490 = vpack.c.bf16 %v487, %v486
        %v491 = vpack.c.bf16 %v489, %v488
        %492 = vset.pattern.permute.xlu0 7
        %493 = vperm.xlu0 %492, %v222
        %v494 = vpop.permute.xlu0 %493
        %496 = vset.pattern.permute.xlu0 7
        %497 = vperm.xlu0 %496, %v223
        %v498 = vpop.permute.xlu0 %497
        %500 = vset.pattern.permute.xlu0 7
        %501 = vperm.xlu0 %500, %v224
        %v502 = vpop.permute.xlu0 %501
        %504 = vset.pattern.permute.xlu0 7
        %505 = vperm.xlu0 %504, %v225
        %v506 = vpop.permute.xlu0 %505
        %508 = vrot.lane.b32.xlu0 %v356, 32
        %v509 = vpop.permute.xlu0 %508
        %510 = vrot.lane.b32.xlu0 %v357, 32
        %v511 = vpop.permute.xlu0 %510
        %v513 = vsel %vm358, %v509, 0
        %v516 = vsel %vm358, %v511, 0
        %518 = vmatpush.bf16.msra.mxu0 0
        %519 = vmatpush.bf16.msra.mxu0 0
        %520 = vmatpush.bf16.msra.mxu0 0
        %521 = vmatpush.bf16.msra.mxu0 0
        %522 = vmatpush.bf16.msra.mxu0 0
        %523 = vmatpush.bf16.msra.mxu0 0
        %524 = vmatpush.bf16.msra.mxu0 %v491
        %525 = vmatpush.bf16.msra.mxu0 %v490
        %526 = vmatmul.bf16.gmra.mxu0 %v513
        %v527 = vpop.f32.mrf.mxu0
        %v528 = vadd.f32 %v494, %v527
        %v529 = vpop.f32.mrf.mxu0
        %v530 = vadd.f32 %v498, %v529
        %531 = vmatmul.bf16.gmra.mxu0 %v516
        %v532 = vpop.f32.mrf.mxu0
        %v533 = vadd.f32 %v502, %v532
        %v534 = vpop.f32.mrf.mxu0
        %v535 = vadd.f32 %v506, %v534
        %536 = vdwg.mxu0
        %v537 = vmax.f32 %v528, 0.0
        %v538 = vmax.f32 %v530, 0.0
        %v539 = vmax.f32 %v533, 0.0
        %v540 = vmax.f32 %v535, 0.0
        %v541 = vld [vmem:[%s3] sm:$0x1]
        %v542 = vpack.c.bf16 %v538, %v537
        %v543 = vpack.c.bf16 %v540, %v539
        %v544 = vld [vmem:[#allocation2] sm:$0x1]
        %546 = vset.pattern.permute.xlu0 0
        %547 = vperm.xlu0 %546, %v544
        %v548 = vpop.permute.xlu0 %547
        %v550 = vperm.slane %v548, 0
        %v552 = vsel %vm358, %v541, 0
        %554 = vmatpush.bf16.msra.mxu0 0
        %555 = vmatpush.bf16.msra.mxu0 0
        %556 = vmatpush.bf16.msra.mxu0 0
        %557 = vmatpush.bf16.msra.mxu0 0
        %558 = vmatpush.bf16.msra.mxu0 0
        %559 = vmatpush.bf16.msra.mxu0 0
        %560 = vmatpush.bf16.msra.mxu0 %v543
        %561 = vmatpush.bf16.msra.mxu0 %v542
        %562 = vmatmul.bf16.gmra.mxu0 %v552
        %v563 = vpop.f32.mrf.mxu0
        %v564 = vadd.f32 %v550, %v563
        %v565 = vpop.f32.mrf.mxu0
        %566 = vdwg.mxu0
        %v567 = vxor.u32 %v564, 2147483648
        %v568 = vmul.f32 %v567, 1.442695
        %v569 = vpow.pop %v568
        %v570 = vadd.f32 %v569, 1.0
        %v571 = vrcp.pop %v570
        %v572 = vmul.f32 %v570, %v571
        %v573 = vsub.f32 1.0, %v572
        %v574 = vmul.f32 %v571, %v573
        %v575 = vadd.f32 %v571, %v574
        %vm576 = vweird.f32 %v570
        %vm577 = vweird.f32 %v571
        %vm578 = vmor %vm576, %vm577
        %v579 = vsel %vm578, %v571, %v575
        %v580 = vand.u32 2147483647, %v570
        %vm581 = vcmp.eq.f32.partialorder %v580, 8.507059e+37
        %v582 = vand.u32 %v570, 2147483648
        %v583 = vor.u32 1.1754944e-38, %v582
        %v584 = vsel %vm581, %v583, %v579
        %v585 = vmul.f32 1.0, %v584
        %586 = vst [vmem:[%s216] sm:$0x1] %v585
        %s587 = sand.u32 %s139, 1
        %s588 = scalar_lea.sflag [#allocation4], %s587
        %s589 = sand.u32 %s139, 1
        %s590 = scalar_lea.vmem [#allocation3], %s589
        // Predicated region
        $region41: #{tpu_custom_call.1} parent=39 // pred_check
          %p591 = pneg %p149
        $region42: #{tpu_custom_call.1} parent=39 // pred_check_branch
          %593 = sbr.rel (%p591) target = $region44
        $region43: #{tpu_custom_call.1} parent=39 // pred_region
          %595 = vsyncadd %s588, 0
          %s596 = scalar_lea.hbm %s5, %s21
          %s598 = sshll.u32 %s590, 4
          %s599 = int_to_ptr.vmem [resolvable:$true] %s598
          %s600 = sshll.u32 %s596, 4
          %s601 = int_to_ptr.hbm [resolvable:$true] %s600
          %603 = dma.vmem_to_hbm [thread:$0]  %s599, 16, %s601, %s588
        $region44: #{tpu_custom_call.1} parent=39 // pred_fallthru
          _
      $region40: #{tpu_custom_call.1} parent=5 // pred_fallthru
        _
      %p604 = scmp.le.s32.totalorder 2, %s16
      // Predicated region
      $region45: #{tpu_custom_call.1} parent=5 // pred_check
        %p605 = pneg %p604
      $region46: #{tpu_custom_call.1} parent=5 // pred_check_branch
        %607 = sbr.rel (%p605) target = $region48
      $region47: #{tpu_custom_call.1} parent=5 // pred_region
        %s608 = ssub.s32 %s16, 2
        // Predicated region
        $region49: #{tpu_custom_call.1} parent=47 // pred_check
          %p609 = pneg %p155
        $region50: #{tpu_custom_call.1} parent=47 // pred_check_branch
          %611 = sbr.rel (%p609) target = $region52
        $region51: #{tpu_custom_call.1} parent=47 // pred_region
          %s612 = sand.u32 %s140, 1
          %s613 = scalar_lea.sflag [#allocation4], %s612
          %s614 = sand.u32 %s140, 1
          %s615 = scalar_lea.vmem [#allocation3], %s614
          %617 = dma.done %s613, 16
        $region52: #{tpu_custom_call.1} parent=47 // pred_fallthru
          _
      $region48: #{tpu_custom_call.1} parent=5 // pred_fallthru
        _
    $region6: #{tpu_custom_call.1} parent=1 // loop_footer
      %s20 = sadd.s32 1, %s16
    $region7: #{tpu_custom_call.1} parent=1 // loop_footer_branch
      %15 = sbr.rel target = $region3
    $region8: #{tpu_custom_call.1} parent=1 // loop_exit
      _
    %618 = vsyncpa [#allocation4], 1
    %s619 = scalar_lea.sflag [#allocation4], 1
    %620 = vsyncpa %s619, 1

</llo_original>
